<compile_context>
chip_gen: v7x
topology: tpu7x:2x2x1
jax: 0.10.0
libtpu: 0.0.40
codegen_flags: <defaults>
</compile_context>

<pallas_src>
import functools

import jax
import jax.numpy as jnp
from jax.experimental import pallas as pl
from jax.experimental.pallas import tpu as pltpu


_LANE = 128
_TILE_VMEM_BUDGET = 16 * 1024 * 1024    # live bytes per grid step (ex-weights)
_FAST_PATH_BUDGET = 4 * 1024 * 1024     # whole-problem footprint for the fast path
_VMEM_LIMIT_CAP = 48 * 1024 * 1024      # safe on v7x (64 MiB physical per TC)
_VMEM_LIMIT_FLOOR = 32 * 1024 * 1024    # lift v5e's 16 MiB scoped default


# ---------------------------------------------------------------------------
# Kernels
# ---------------------------------------------------------------------------

def _gates_tile_kernel(x_ref, w1_ref, b1_ref, w2_ref, b2_ref, o_ref, *, mxu_dtype):
    # x_ref : (Cin,  tL)   tokens on the lane axis (lane-dense)
    # w1_ref: (H,    Cin)  full fc1 weight (PyTorch (out, in) layout)
    # b1_ref: (H,    1)
    # w2_ref: (Cout, H)    full fc2 weight
    # b2_ref: (Cout, 1)
    # o_ref : (Cout, tL)   lane-dense output block
    xa = x_ref[...].astype(mxu_dtype)
    w1 = w1_ref[...].astype(mxu_dtype)
    h = jnp.dot(w1, xa, preferred_element_type=jnp.float32)
    h = jnp.maximum(h + b1_ref[...], 0.0)          # bias + ReLU in f32 (VPU)
    w2 = w2_ref[...].astype(mxu_dtype)
    y = jnp.dot(w2, h.astype(mxu_dtype), preferred_element_type=jnp.float32)
    y = y + b2_ref[...]
    o_ref[...] = y.astype(o_ref.dtype)
    # TODO(synk): if a bundle dump shows the vmatmul slot saturated, move the
    # tiny second projection (Cout x H) to the VPU as an unrolled MAC over H.


def _gates_batched_kernel(x_ref, w1_ref, b1_ref, w2_ref, b2_ref, o_ref, *,
                          mxu_dtype, batch):
    # Small-problem fast path: whole (B, Cin, L) resident in VMEM, one grid step.
    w1 = w1_ref[...].astype(mxu_dtype)
    w2 = w2_ref[...].astype(mxu_dtype)
    b1 = b1_ref[...]
    b2 = b2_ref[...]
    for b in range(batch):                          # static, unrolled
        xb = x_ref[b].astype(mxu_dtype)
        h = jnp.dot(w1, xb, preferred_element_type=jnp.float32)
        h = jnp.maximum(h + b1, 0.0)
        y = jnp.dot(w2, h.astype(mxu_dtype), preferred_element_type=jnp.float32)
        o_ref[b] = (y + b2).astype(o_ref.dtype)


# ---------------------------------------------------------------------------
# Wrapper
# ---------------------------------------------------------------------------

def _per_column_bytes(cin, cout, h, in_sz, out_sz, mxu_sz):
    # Per length-column live bytes for one grid step: double-buffered x and out
    # blocks, the f32 (H, tL) intermediate, plus the mxu-dtype copies of x / h
    # materialized before each dot.
    return 2 * cin * in_sz + 2 * cout * out_sz + 4 * h + mxu_sz * (h + cin)


@functools.partial(jax.jit, static_argnames=("tl", "use_bf16_mxu"))
def gates_forward(x, w1, b1, w2, b2, *, tl=None, use_bf16_mxu=True):
    """x: (B, input_dim, L) -> (B, output_dim, L).

    tl=None picks a VMEM-budget-driven, lane-aligned length tile. use_bf16_mxu
    casts the MXU operands to bf16 (accumulation stays f32); set False for
    bit-faithful f32 matmuls.
    """
    B, Cin, L = x.shape
    H = w1.shape[0]
    Cout = w2.shape[0]

    mxu_dtype = jnp.bfloat16 if use_bf16_mxu else jnp.float32
    in_sz = jnp.dtype(x.dtype).itemsize
    out_sz = in_sz
    mxu_sz = jnp.dtype(mxu_dtype).itemsize

    b1c = b1.reshape(H, 1)
    b2c = b2.reshape(Cout, 1)

    # ---- Small-problem fast path: fold B into a single grid step. -----------
    fast_bytes = B * L * (Cin * in_sz + Cout * out_sz + 4 * H + mxu_sz * (H + Cin))
    if tl is None and fast_bytes <= _FAST_PATH_BUDGET:
        kernel = functools.partial(_gates_batched_kernel, mxu_dtype=mxu_dtype, batch=B)
        return pl.pallas_call(
            kernel,
            out_shape=jax.ShapeDtypeStruct((B, Cout, L), x.dtype),
            grid_spec=pltpu.PrefetchScalarGridSpec(
                num_scalar_prefetch=0,
                grid=(1,),
                in_specs=[
                    pl.BlockSpec((B, Cin, L), lambda i: (0, 0, 0)),
                    pl.BlockSpec((H, Cin), lambda i: (0, 0)),
                    pl.BlockSpec((H, 1), lambda i: (0, 0)),
                    pl.BlockSpec((Cout, H), lambda i: (0, 0)),
                    pl.BlockSpec((Cout, 1), lambda i: (0, 0)),
                ],
                out_specs=pl.BlockSpec((B, Cout, L), lambda i: (0, 0, 0)),
            ),
        )(x, w1, b1c, w2, b2c)

    # ---- Tiled path: VMEM-budget-driven lane-aligned length tile. ------------
    per_col = _per_column_bytes(Cin, Cout, H, in_sz, out_sz, mxu_sz)
    if tl is None:
        tl = max(_LANE, (_TILE_VMEM_BUDGET // per_col) // _LANE * _LANE)
    elif tl < L:
        tl = max(_LANE, (tl // _LANE) * _LANE)      # lane-aligned explicit tile

    if tl >= L:
        tl = L                                      # single full-extent tile along L
        # v7x has 2 TensorCores: with B == 1 split L so both cores get a step.
        if B == 1 and L > _LANE:
            tl = min(L, ((pl.cdiv(L, 2) + _LANE - 1) // _LANE) * _LANE)

    weight_bytes = 4 * (H * Cin + Cout * H + H + Cout)
    est = per_col * tl + weight_bytes + (2 << 20)   # working set + slack
    vmem_limit = int(min(_VMEM_LIMIT_CAP, max(_VMEM_LIMIT_FLOOR, est + (8 << 20))))

    grid = (B, pl.cdiv(L, tl))
    kernel = functools.partial(_gates_tile_kernel, mxu_dtype=mxu_dtype)

    return pl.pallas_call(
        kernel,
        out_shape=jax.ShapeDtypeStruct((B, Cout, L), x.dtype),
        grid_spec=pltpu.PrefetchScalarGridSpec(
            num_scalar_prefetch=0,
            grid=grid,
            in_specs=[
                # x consumed directly in native (B, Cin, L) layout; batch dim squeezed.
                pl.BlockSpec((pl.Squeezed(), Cin, tl), lambda b, l: (b, 0, l)),
                pl.BlockSpec((H, Cin), lambda b, l: (0, 0)),      # W1 (constant)
                pl.BlockSpec((H, 1), lambda b, l: (0, 0)),        # b1
                pl.BlockSpec((Cout, H), lambda b, l: (0, 0)),     # W2 (constant)
                pl.BlockSpec((Cout, 1), lambda b, l: (0, 0)),     # b2
            ],
            # Lane-dense output block: last dim is tL (>=128), not Cout.
            out_specs=pl.BlockSpec((pl.Squeezed(), Cout, tl), lambda b, l: (b, 0, l)),
        ),
        compiler_params=pltpu.CompilerParams(
            dimension_semantics=("parallel", "parallel"),
            vmem_limit_bytes=vmem_limit),
    )(x, w1, b1c, w2, b2c)


# ---------------------------------------------------------------------------
# Params / reference
# ---------------------------------------------------------------------------

def init_gates_params(key, input_dim, mlp_dim, output_dim, dtype=jnp.float32):
    """PyTorch Conv1d-style init (uniform +/- 1/sqrt(fan_in)); weights kept in
    (out_channels, in_channels) layout (kernel dim of size 1 squeezed)."""
    k1, k2, k3, k4 = jax.random.split(key, 4)
    bound1 = 1.0 / (input_dim ** 0.5)
    bound2 = 1.0 / (mlp_dim ** 0.5)
    w1 = jax.random.uniform(k1, (mlp_dim, input_dim), dtype, -bound1, bound1)
    b1 = jax.random.uniform(k2, (mlp_dim,), dtype, -bound1, bound1)
    w2 = jax.random.uniform(k3, (output_dim, mlp_dim), dtype, -bound2, bound2)
    b2 = jax.random.uniform(k4, (output_dim,), dtype, -bound2, bound2)
    return w1, b1, w2, b2


def gates_reference(x, w1, b1, w2, b2):
    """Pure-JAX reference identical to the PyTorch forward (batch_norm=False)."""
    h = jnp.einsum("hc,bcl->bhl", w1, x) + b1[None, :, None]
    h = jnp.maximum(h, 0.0)
    return jnp.einsum("oh,bhl->bol", w2, h) + b2[None, :, None]


# TODO(synk): batch_norm=True branch (nn.BatchNorm1d) not implemented; module default is False.

if __name__ == "__main__":
    key = jax.random.PRNGKey(0)
    kx, kp, kx2, kx3 = jax.random.split(key, 4)

    B, input_dim, L = 2, 16, 32
    mlp_dim, output_dim = 64, 8
    w1, b1, w2, b2 = init_gates_params(kp, input_dim, mlp_dim, output_dim)

    # Test 1: tiny shape -> small-problem fast path (batch folded, 1 grid step).
    x = jax.random.normal(kx, (B, input_dim, L), dtype=jnp.float32)
    ref = gates_reference(x, w1, b1, w2, b2)
    out = jax.block_until_ready(gates_forward(x, w1, b1, w2, b2, use_bf16_mxu=False))
    assert out.shape == (B, output_dim, L), out.shape
    assert jnp.allclose(out, ref, atol=1e-5, rtol=1e-5), float(jnp.max(jnp.abs(out - ref)))
    out_bf = jax.block_until_ready(gates_forward(x, w1, b1, w2, b2))   # default bf16 MXU operands
    assert jnp.allclose(out_bf, ref, atol=5e-2, rtol=5e-2), float(jnp.max(jnp.abs(out_bf - ref)))

    # Test 2: longer sequence, explicit small tile -> tiled path with multiple
    # lane-aligned L-tiles plus a masked partial last tile; exact f32 check.
    L2 = 700
    x2 = jax.random.normal(kx2, (B, input_dim, L2), dtype=jnp.float32)
    ref2 = gates_reference(x2, w1, b1, w2, b2)
    out2 = jax.block_until_ready(gates_forward(x2, w1, b1, w2, b2, tl=256, use_bf16_mxu=False))
    assert out2.shape == (B, output_dim, L2), out2.shape
    assert jnp.allclose(out2, ref2, atol=1e-5, rtol=1e-5), float(jnp.max(jnp.abs(out2 - ref2)))

    # Test 3: B=1 long sequence with auto tiling -> exercises the v7x megacore
    # guard (L split into >=2 tiles) and the default bf16 MXU path.
    L3 = 9000
    x3 = jax.random.normal(kx3, (1, input_dim, L3), dtype=jnp.float32)
    ref3 = gates_reference(x3, w1, b1, w2, b2)
    out3 = jax.block_until_ready(gates_forward(x3, w1, b1, w2, b2))
    assert out3.shape == (1, output_dim, L3), out3.shape
    assert jnp.allclose(out3, ref3, atol=5e-2, rtol=5e-2), float(jnp.max(jnp.abs(out3 - ref3)))

    print("KERNEL_OK")
</pallas_src>

<mosaic_0001>
module attributes {stable_mosaic.version = 11 : i64} {
  func.func @_gates_batched_kernel(%arg0: i32, %arg1: memref<2x16x32xf32, #tpu.memory_space<vmem>>, %arg2: memref<64x16xf32, #tpu.memory_space<vmem>>, %arg3: memref<64x1xf32, #tpu.memory_space<vmem>>, %arg4: memref<8x64xf32, #tpu.memory_space<vmem>>, %arg5: memref<8x1xf32, #tpu.memory_space<vmem>>, %arg6: memref<2x8x32xf32, #tpu.memory_space<vmem>>) attributes {dimension_semantics = [#tpu.dimension_semantics<arbitrary>], iteration_bounds = array<i64: 1>, scalar_prefetch = 0 : i64, scratch_operands = 0 : i64, tpu.core_type = #tpu.core_type<tc>, window_params = [{pipeline_mode = #tpu.pipeline_mode<synchronous>, transform_indices = @transform_0, window_bounds = array<i64: 2, 16, 32>}, {pipeline_mode = #tpu.pipeline_mode<synchronous>, transform_indices = @transform_1, window_bounds = array<i64: 64, 16>}, {pipeline_mode = #tpu.pipeline_mode<synchronous>, transform_indices = @transform_2, window_bounds = array<i64: 64, 1>}, {pipeline_mode = #tpu.pipeline_mode<synchronous>, transform_indices = @transform_3, window_bounds = array<i64: 8, 64>}, {pipeline_mode = #tpu.pipeline_mode<synchronous>, transform_indices = @transform_4, window_bounds = array<i64: 8, 1>}, {pipeline_mode = #tpu.pipeline_mode<synchronous>, transform_indices = @transform_5, window_bounds = array<i64: 2, 8, 32>}]} {
    %c0 = arith.constant 0 : index
    %c0_0 = arith.constant 0 : index
    %0 = vector.load %arg2[%c0, %c0_0] : memref<64x16xf32, #tpu.memory_space<vmem>>, vector<64x16xf32>
    %c0_1 = arith.constant 0 : index
    %c0_2 = arith.constant 0 : index
    %1 = vector.load %arg4[%c0_1, %c0_2] : memref<8x64xf32, #tpu.memory_space<vmem>>, vector<8x64xf32>
    %c0_3 = arith.constant 0 : index
    %c0_4 = arith.constant 0 : index
    %2 = vector.load %arg3[%c0_3, %c0_4] : memref<64x1xf32, #tpu.memory_space<vmem>>, vector<64x1xf32>
    %c0_5 = arith.constant 0 : index
    %c0_6 = arith.constant 0 : index
    %3 = vector.load %arg5[%c0_5, %c0_6] : memref<8x1xf32, #tpu.memory_space<vmem>>, vector<8x1xf32>
    %c0_7 = arith.constant 0 : index
    %c0_8 = arith.constant 0 : index
    %c0_9 = arith.constant 0 : index
    %4 = vector.load %arg1[%c0_7, %c0_8, %c0_9] : memref<2x16x32xf32, #tpu.memory_space<vmem>>, vector<1x16x32xf32>
    %5 = vector.shape_cast %4 : vector<1x16x32xf32> to vector<16x32xf32>
    %cst = arith.constant dense<0.000000e+00> : vector<64x32xf32>
    %6 = tpu.matmul %0, %5, %cst {dimension_numbers = #tpu.dot_dimension_numbers<[1], [0], [0], [1], [0, 0, 1, 1], [], []>} : vector<64x16xf32>, vector<16x32xf32>, vector<64x32xf32> -> vector<64x32xf32>
    %7 = vector.broadcast %2 : vector<64x1xf32> to vector<64x32xf32>
    %8 = arith.addf %6, %7 : vector<64x32xf32>
    %cst_10 = arith.constant 0.000000e+00 : f32
    %9 = vector.broadcast %cst_10 : f32 to vector<64x32xf32>
    %10 = arith.maximumf %8, %9 : vector<64x32xf32>
    %cst_11 = arith.constant dense<0.000000e+00> : vector<8x32xf32>
    %11 = tpu.matmul %1, %10, %cst_11 {dimension_numbers = #tpu.dot_dimension_numbers<[1], [0], [0], [1], [0, 0, 1, 1], [], []>} : vector<8x64xf32>, vector<64x32xf32>, vector<8x32xf32> -> vector<8x32xf32>
    %12 = vector.broadcast %3 : vector<8x1xf32> to vector<8x32xf32>
    %13 = arith.addf %11, %12 : vector<8x32xf32>
    %c0_12 = arith.constant 0 : index
    %c0_13 = arith.constant 0 : index
    %c0_14 = arith.constant 0 : index
    %14 = vector.load %arg6[%c0_12, %c0_13, %c0_14] : memref<2x8x32xf32, #tpu.memory_space<vmem>>, vector<1x8x32xf32>
    %15 = vector.shape_cast %14 : vector<1x8x32xf32> to vector<8x32xf32>
    %16 = vector.shape_cast %13 : vector<8x32xf32> to vector<1x8x32xf32>
    tpu.vector_store %arg6[%c0_12, %c0_13, %c0_14], %16 {strides = array<i32>} : memref<2x8x32xf32, #tpu.memory_space<vmem>>, vector<1x8x32xf32>,
    %c1 = arith.constant 1 : index
    %c0_15 = arith.constant 0 : index
    %c0_16 = arith.constant 0 : index
    %17 = vector.load %arg1[%c1, %c0_15, %c0_16] : memref<2x16x32xf32, #tpu.memory_space<vmem>>, vector<1x16x32xf32>
    %18 = vector.shape_cast %17 : vector<1x16x32xf32> to vector<16x32xf32>
    %cst_17 = arith.constant dense<0.000000e+00> : vector<64x32xf32>
    %19 = tpu.matmul %0, %18, %cst_17 {dimension_numbers = #tpu.dot_dimension_numbers<[1], [0], [0], [1], [0, 0, 1, 1], [], []>} : vector<64x16xf32>, vector<16x32xf32>, vector<64x32xf32> -> vector<64x32xf32>
    %20 = vector.broadcast %2 : vector<64x1xf32> to vector<64x32xf32>
    %21 = arith.addf %19, %20 : vector<64x32xf32>
    %cst_18 = arith.constant 0.000000e+00 : f32
    %22 = vector.broadcast %cst_18 : f32 to vector<64x32xf32>
    %23 = arith.maximumf %21, %22 : vector<64x32xf32>
    %cst_19 = arith.constant dense<0.000000e+00> : vector<8x32xf32>
    %24 = tpu.matmul %1, %23, %cst_19 {dimension_numbers = #tpu.dot_dimension_numbers<[1], [0], [0], [1], [0, 0, 1, 1], [], []>} : vector<8x64xf32>, vector<64x32xf32>, vector<8x32xf32> -> vector<8x32xf32>
    %25 = vector.broadcast %3 : vector<8x1xf32> to vector<8x32xf32>
    %26 = arith.addf %24, %25 : vector<8x32xf32>
    %c1_20 = arith.constant 1 : index
    %c0_21 = arith.constant 0 : index
    %c0_22 = arith.constant 0 : index
    %27 = vector.load %arg6[%c1_20, %c0_21, %c0_22] : memref<2x8x32xf32, #tpu.memory_space<vmem>>, vector<1x8x32xf32>
    %28 = vector.shape_cast %27 : vector<1x8x32xf32> to vector<8x32xf32>
    %29 = vector.shape_cast %26 : vector<8x32xf32> to vector<1x8x32xf32>
    tpu.vector_store %arg6[%c1_20, %c0_21, %c0_22], %29 {strides = array<i32>} : memref<2x8x32xf32, #tpu.memory_space<vmem>>, vector<1x8x32xf32>,
    return
  }
  func.func @transform_0(%arg0: i32) -> (i32, i32, i32) {
    %c0_i32 = arith.constant 0 : i32
    %c0_i32_0 = arith.constant 0 : i32
    %c0_i32_1 = arith.constant 0 : i32
    %c0_i32_2 = arith.constant 0 : i32
    return %c0_i32, %c0_i32_0, %c0_i32_1 : i32, i32, i32
  }
  func.func @transform_1(%arg0: i32) -> (i32, i32) {
    %c0_i32 = arith.constant 0 : i32
    %c0_i32_0 = arith.constant 0 : i32
    %c0_i32_1 = arith.constant 0 : i32
    return %c0_i32, %c0_i32_0 : i32, i32
  }
  func.func @transform_2(%arg0: i32) -> (i32, i32) {
    %c0_i32 = arith.constant 0 : i32
    %c0_i32_0 = arith.constant 0 : i32
    %c0_i32_1 = arith.constant 0 : i32
    return %c0_i32, %c0_i32_0 : i32, i32
  }
  func.func @transform_3(%arg0: i32) -> (i32, i32) {
    %c0_i32 = arith.constant 0 : i32
    %c0_i32_0 = arith.constant 0 : i32
    %c0_i32_1 = arith.constant 0 : i32
    return %c0_i32, %c0_i32_0 : i32, i32
  }
  func.func @transform_4(%arg0: i32) -> (i32, i32) {
    %c0_i32 = arith.constant 0 : i32
    %c0_i32_0 = arith.constant 0 : i32
    %c0_i32_1 = arith.constant 0 : i32
    return %c0_i32, %c0_i32_0 : i32, i32
  }
  func.func @transform_5(%arg0: i32) -> (i32, i32, i32) {
    %c0_i32 = arith.constant 0 : i32
    %c0_i32_0 = arith.constant 0 : i32
    %c0_i32_1 = arith.constant 0 : i32
    %c0_i32_2 = arith.constant 0 : i32
    return %c0_i32, %c0_i32_0, %c0_i32_1 : i32, i32, i32
  }
}

</mosaic_0001>

<llo_original>
// kernel: gates_forward.1
$region0: #{gates_forward.1}
  #allocation0 [shape = 'u32[]', space=smem, size = 0x4, offset = 0x4, fixed_abs, tag = 'smem constant byte address 0x4 - core index']
  #allocation1 [shape = 'u32[144,128]{1,0:T(1,128)}', space=vmem, size = 0x12000, scoped, tag = 'internal scratch']
  %s0 = inlined_call_operand.vmem [shape: f32[2,16,32], index: 0, kind: input, shape index: {}]
  %s1 = inlined_call_operand.vmem [shape: f32[64,16], index: 1, kind: input, shape index: {}]
  %s2 = inlined_call_operand.vmem [shape: f32[64,1], index: 2, kind: input, shape index: {}]
  %s3 = inlined_call_operand.vmem [shape: f32[8,64], index: 3, kind: input, shape index: {}]
  %s4 = inlined_call_operand.vmem [shape: f32[8,1], index: 4, kind: input, shape index: {}]
  %s5 = inlined_call_operand.hbm [shape: f32[2,8,32], index: 5, kind: output, shape index: {}]
  %s6 = sld [smem:[#allocation0]]
  $region30: #{gates_forward.1} parent=0
    _
  %s8 = ssub.s32 1, %s6
  %s9 = scalar_select 0, %s8, %s6
  $region1: #{gates_forward.1} parent=0
    #allocation2 [shape = 'u8[8192]{0}', space=vmem, size = 0x2000, scoped, tag = 'output window, operand 0, single buffered']
    #allocation3 [shape = 's32[1]{0}', space=sflag, size = 0x4, scoped, tag = 'scoped memory for gates_forward.1']
    %10 = vsyncpa [#allocation3], 0
    // Predicated region
    $region2: #{gates_forward.1} parent=1 // pred_check
      _
    $region3: #{gates_forward.1} parent=1 // pred_check_branch
      %12 = sbr.rel (0) target = $region5
    $region4: #{gates_forward.1} parent=1 // pred_region
      _
    $region5: #{gates_forward.1} parent=1 // pred_fallthru
      _
    // Predicated region
    $region6: #{gates_forward.1} parent=1 // pred_check
      _
    $region7: #{gates_forward.1} parent=1 // pred_check_branch
      %14 = sbr.rel (0) target = $region9
    $region8: #{gates_forward.1} parent=1 // pred_region
      _
    $region9: #{gates_forward.1} parent=1 // pred_fallthru
      _
    // Predicated region
    $region10: #{gates_forward.1} parent=1 // pred_check
      _
    $region11: #{gates_forward.1} parent=1 // pred_check_branch
      %16 = sbr.rel (0) target = $region13
    $region12: #{gates_forward.1} parent=1 // pred_region
      _
    $region13: #{gates_forward.1} parent=1 // pred_fallthru
      _
    // Predicated region
    $region14: #{gates_forward.1} parent=1 // pred_check
      _
    $region15: #{gates_forward.1} parent=1 // pred_check_branch
      %18 = sbr.rel (0) target = $region17
    $region16: #{gates_forward.1} parent=1 // pred_region
      _
    $region17: #{gates_forward.1} parent=1 // pred_fallthru
      _
    // Predicated region
    $region18: #{gates_forward.1} parent=1 // pred_check
      _
    $region19: #{gates_forward.1} parent=1 // pred_check_branch
      %20 = sbr.rel (0) target = $region21
    $region20: #{gates_forward.1} parent=1 // pred_region
      _
    $region21: #{gates_forward.1} parent=1 // pred_fallthru
      _
    %v21 = vld [vmem:[%s1] sm:$0xff]
    %v22 = vld [vmem:[%s1 + $0x8] sm:$0xff]
    %v23 = vld [vmem:[%s1 + $0x10] sm:$0xff]
    %v24 = vld [vmem:[%s1 + $0x18] sm:$0xff]
    %v25 = vld [vmem:[%s1 + $0x20] sm:$0xff]
    %v26 = vld [vmem:[%s1 + $0x28] sm:$0xff]
    %v27 = vld [vmem:[%s1 + $0x30] sm:$0xff]
    %v28 = vld [vmem:[%s1 + $0x38] sm:$0xff]
    %v29 = vld [vmem:[%s3] sm:$0xff]
    %v30 = vld [vmem:[%s2] sm:$0xff]
    %v31 = vld [vmem:[%s2 + $0x8] sm:$0xff]
    %v32 = vld [vmem:[%s2 + $0x10] sm:$0xff]
    %v33 = vld [vmem:[%s2 + $0x18] sm:$0xff]
    %v34 = vld [vmem:[%s2 + $0x20] sm:$0xff]
    %v35 = vld [vmem:[%s2 + $0x28] sm:$0xff]
    %v36 = vld [vmem:[%s2 + $0x30] sm:$0xff]
    %v37 = vld [vmem:[%s2 + $0x38] sm:$0xff]
    %v38 = vld [vmem:[%s4] sm:$0xff]
    %v39 = vld [vmem:[%s0] sm:$0xff]
    %v40 = vld [vmem:[%s0 + $0x8] sm:$0xff]
    %42 = vset.pattern.permute.xlu0 0
    %43 = vperm.xlu0 %42, %v30
    %v44 = vpop.permute.xlu0 %43
    %47 = vset.pattern.permute.xlu0 0
    %48 = vperm.xlu0 %47, %v31
    %v49 = vpop.permute.xlu0 %48
    %52 = vset.pattern.permute.xlu0 0
    %53 = vperm.xlu0 %52, %v32
    %v54 = vpop.permute.xlu0 %53
    %57 = vset.pattern.permute.xlu0 0
    %58 = vperm.xlu0 %57, %v33
    %v59 = vpop.permute.xlu0 %58
    %62 = vset.pattern.permute.xlu0 0
    %63 = vperm.xlu0 %62, %v34
    %v64 = vpop.permute.xlu0 %63
    %67 = vset.pattern.permute.xlu0 0
    %68 = vperm.xlu0 %67, %v35
    %v69 = vpop.permute.xlu0 %68
    %72 = vset.pattern.permute.xlu0 0
    %73 = vperm.xlu0 %72, %v36
    %v74 = vpop.permute.xlu0 %73
    %77 = vset.pattern.permute.xlu0 0
    %78 = vperm.xlu0 %77, %v37
    %v79 = vpop.permute.xlu0 %78
    %vm81 = vcmask 130048
    %v83 = vsel %vm81, %v21, 0
    %v86 = vsel %vm81, %v22, 0
    %v89 = vsel %vm81, %v23, 0
    %v92 = vsel %vm81, %v24, 0
    %v95 = vsel %vm81, %v25, 0
    %v98 = vsel %vm81, %v26, 0
    %v101 = vsel %vm81, %v27, 0
    %v104 = vsel %vm81, %v28, 0
    %106 = vmatprep.subr.mxu0 0.0
    %107 = vmatpush1.msra.mxu0 %v39
    %108 = vmatprep.subr.mxu0 0.0
    %109 = vmatpush1.msra.mxu0 %v40
    %110 = vmatprep.subr.mxu0 0.0
    %111 = vmatpush1.msra.mxu0 0.0
    %112 = vmatprep.subr.mxu0 0.0
    %113 = vmatpush1.msra.mxu0 0.0
    %114 = vmatprep.subr.mxu0 0.0
    %115 = vmatpush1.msra.mxu0 0.0
    %116 = vmatprep.subr.mxu0 0.0
    %117 = vmatpush1.msra.mxu0 0.0
    %118 = vmatprep.subr.mxu0 0.0
    %119 = vmatpush1.msra.mxu0 0.0
    %120 = vmatprep.subr.mxu0 0.0
    %121 = vmatpush1.msra.mxu0 0.0
    %122 = vmatprep.subr.mxu0 0.0
    %123 = vmatpush1.msra.mxu0 0.0
    %124 = vmatprep.subr.mxu0 0.0
    %125 = vmatpush1.msra.mxu0 0.0
    %126 = vmatprep.subr.mxu0 0.0
    %127 = vmatpush1.msra.mxu0 0.0
    %128 = vmatprep.subr.mxu0 0.0
    %129 = vmatpush1.msra.mxu0 0.0
    %130 = vmatprep.subr.mxu0 0.0
    %131 = vmatpush1.msra.mxu0 0.0
    %132 = vmatprep.subr.mxu0 0.0
    %133 = vmatpush1.msra.mxu0 0.0
    %134 = vmatprep.subr.mxu0 0.0
    %135 = vmatpush1.msra.mxu0 0.0
    %136 = vmatprep.subr.mxu0 0.0
    %137 = vmatpush1.msra.mxu0 0.0
    %138 = vmatprep.subr.mxu0 0.0
    %139 = vmatpush1.msra.mxu0 0.0
    %140 = vmatprep.subr.mxu0 0.0
    %141 = vmatpush1.msra.mxu0 0.0
    %142 = vmatprep.subr.mxu0 0.0
    %143 = vmatpush1.msra.mxu0 0.0
    %144 = vmatprep.subr.mxu0 0.0
    %145 = vmatpush1.msra.mxu0 0.0
    %146 = vmatprep.subr.mxu0 0.0
    %147 = vmatpush1.msra.mxu0 0.0
    %148 = vmatprep.subr.mxu0 0.0
    %149 = vmatpush1.msra.mxu0 0.0
    %150 = vmatprep.subr.mxu0 0.0
    %151 = vmatpush1.msra.mxu0 0.0
    %152 = vmatprep.subr.mxu0 0.0
    %153 = vmatpush1.msra.mxu0 0.0
    %154 = vmatprep.subr.mxu0 0.0
    %155 = vmatpush1.msra.mxu0 0.0
    %156 = vmatprep.subr.mxu0 0.0
    %157 = vmatpush1.msra.mxu0 0.0
    %158 = vmatprep.subr.mxu0 0.0
    %159 = vmatpush1.msra.mxu0 0.0
    %160 = vmatprep.subr.mxu0 0.0
    %161 = vmatpush1.msra.mxu0 0.0
    %162 = vmatprep.subr.mxu0 0.0
    %163 = vmatpush1.msra.mxu0 0.0
    %164 = vmatprep.subr.mxu0 0.0
    %165 = vmatpush1.msra.mxu0 0.0
    %166 = vmatprep.subr.mxu0 0.0
    %167 = vmatpush1.msra.mxu0 0.0
    %168 = vmatprep.subr.mxu0 0.0
    %169 = vmatpush1.msra.mxu0 0.0
    %170 = vmatprep.mubr.f32.mxu0 0.0
    %171 = vmatmul.mubr.f32.gmra.mrb[0].mxu0 %v83
    %v172 = vpop.f32.mrb[0].mxu0
    %v173 = vadd.f32 %v44, %v172
    %v174 = vpop.f32.mrb[0].mxu0
    %175 = vmatprep.mubr.f32.mxu0 0.0
    %176 = vmatmul.mubr.f32.gmra.mrb[0].mxu0 %v86
    %v177 = vpop.f32.mrb[0].mxu0
    %v178 = vadd.f32 %v49, %v177
    %v179 = vpop.f32.mrb[0].mxu0
    %180 = vmatprep.mubr.f32.mxu0 0.0
    %181 = vmatmul.mubr.f32.gmra.mrb[0].mxu0 %v89
    %v182 = vpop.f32.mrb[0].mxu0
    %v183 = vadd.f32 %v54, %v182
    %v184 = vpop.f32.mrb[0].mxu0
    %185 = vmatprep.mubr.f32.mxu0 0.0
    %186 = vmatmul.mubr.f32.gmra.mrb[0].mxu0 %v92
    %v187 = vpop.f32.mrb[0].mxu0
    %v188 = vadd.f32 %v59, %v187
    %v189 = vpop.f32.mrb[0].mxu0
    %190 = vmatprep.mubr.f32.mxu0 0.0
    %191 = vmatmul.mubr.f32.gmra.mrb[0].mxu0 %v95
    %v192 = vpop.f32.mrb[0].mxu0
    %v193 = vadd.f32 %v64, %v192
    %v194 = vpop.f32.mrb[0].mxu0
    %195 = vmatprep.mubr.f32.mxu0 0.0
    %196 = vmatmul.mubr.f32.gmra.mrb[0].mxu0 %v98
    %v197 = vpop.f32.mrb[0].mxu0
    %v198 = vadd.f32 %v69, %v197
    %v199 = vpop.f32.mrb[0].mxu0
    %200 = vmatprep.mubr.f32.mxu0 0.0
    %201 = vmatmul.mubr.f32.gmra.mrb[0].mxu0 %v101
    %v202 = vpop.f32.mrb[0].mxu0
    %v203 = vadd.f32 %v74, %v202
    %v204 = vpop.f32.mrb[0].mxu0
    %205 = vmatprep.mubr.f32.mxu0 0.0
    %206 = vmatmul.mubr.f32.gmra.mrb[0].mxu0 %v104
    %v207 = vpop.f32.mrb[0].mxu0
    %v208 = vadd.f32 %v79, %v207
    %v209 = vpop.f32.mrb[0].mxu0
    %210 = vdwg.mxu0
    %v211 = vmax.f32 %v173, 0.0
    %v212 = vmax.f32 %v178, 0.0
    %v213 = vmax.f32 %v183, 0.0
    %v214 = vmax.f32 %v188, 0.0
    %v215 = vmax.f32 %v193, 0.0
    %v216 = vmax.f32 %v198, 0.0
    %v217 = vmax.f32 %v203, 0.0
    %v218 = vmax.f32 %v208, 0.0
    %220 = vset.pattern.permute.xlu0 0
    %221 = vperm.xlu0 %220, %v38
    %v222 = vpop.permute.xlu0 %221
    %vm224 = vcmask 523264
    %v226 = vsel %vm224, %v29, 0
    %228 = vmatprep.subr.mxu0 0.0
    %229 = vmatpush1.msra.mxu0 %v211
    %230 = vmatprep.subr.mxu0 0.0
    %231 = vmatpush1.msra.mxu0 %v212
    %232 = vmatprep.subr.mxu0 0.0
    %233 = vmatpush1.msra.mxu0 %v213
    %234 = vmatprep.subr.mxu0 0.0
    %235 = vmatpush1.msra.mxu0 %v214
    %236 = vmatprep.subr.mxu0 0.0
    %237 = vmatpush1.msra.mxu0 %v215
    %238 = vmatprep.subr.mxu0 0.0
    %239 = vmatpush1.msra.mxu0 %v216
    %240 = vmatprep.subr.mxu0 0.0
    %241 = vmatpush1.msra.mxu0 %v217
    %242 = vmatprep.subr.mxu0 0.0
    %243 = vmatpush1.msra.mxu0 %v218
    %244 = vmatprep.subr.mxu0 0.0
    %245 = vmatpush1.msra.mxu0 0.0
    %246 = vmatprep.subr.mxu0 0.0
    %247 = vmatpush1.msra.mxu0 0.0
    %248 = vmatprep.subr.mxu0 0.0
    %249 = vmatpush1.msra.mxu0 0.0
    %250 = vmatprep.subr.mxu0 0.0
    %251 = vmatpush1.msra.mxu0 0.0
    %252 = vmatprep.subr.mxu0 0.0
    %253 = vmatpush1.msra.mxu0 0.0
    %254 = vmatprep.subr.mxu0 0.0
    %255 = vmatpush1.msra.mxu0 0.0
    %256 = vmatprep.subr.mxu0 0.0
    %257 = vmatpush1.msra.mxu0 0.0
    %258 = vmatprep.subr.mxu0 0.0
    %259 = vmatpush1.msra.mxu0 0.0
    %260 = vmatprep.subr.mxu0 0.0
    %261 = vmatpush1.msra.mxu0 0.0
    %262 = vmatprep.subr.mxu0 0.0
    %263 = vmatpush1.msra.mxu0 0.0
    %264 = vmatprep.subr.mxu0 0.0
    %265 = vmatpush1.msra.mxu0 0.0
    %266 = vmatprep.subr.mxu0 0.0
    %267 = vmatpush1.msra.mxu0 0.0
    %268 = vmatprep.subr.mxu0 0.0
    %269 = vmatpush1.msra.mxu0 0.0
    %270 = vmatprep.subr.mxu0 0.0
    %271 = vmatpush1.msra.mxu0 0.0
    %272 = vmatprep.subr.mxu0 0.0
    %273 = vmatpush1.msra.mxu0 0.0
    %274 = vmatprep.subr.mxu0 0.0
    %275 = vmatpush1.msra.mxu0 0.0
    %276 = vmatprep.subr.mxu0 0.0
    %277 = vmatpush1.msra.mxu0 0.0
    %278 = vmatprep.subr.mxu0 0.0
    %279 = vmatpush1.msra.mxu0 0.0
    %280 = vmatprep.subr.mxu0 0.0
    %281 = vmatpush1.msra.mxu0 0.0
    %282 = vmatprep.subr.mxu0 0.0
    %283 = vmatpush1.msra.mxu0 0.0
    %284 = vmatprep.subr.mxu0 0.0
    %285 = vmatpush1.msra.mxu0 0.0
    %286 = vmatprep.subr.mxu0 0.0
    %287 = vmatpush1.msra.mxu0 0.0
    %288 = vmatprep.subr.mxu0 0.0
    %289 = vmatpush1.msra.mxu0 0.0
    %290 = vmatprep.subr.mxu0 0.0
    %291 = vmatpush1.msra.mxu0 0.0
    %292 = vmatprep.mubr.f32.mxu0 0.0
    %293 = vmatmul.mubr.f32.gmra.mrb[0].mxu0 %v226
    %v294 = vpop.f32.mrb[0].mxu0
    %v295 = vadd.f32 %v222, %v294
    %v296 = vpop.f32.mrb[0].mxu0
    %297 = vdwg.mxu0
    %vm298 = vcmask 261120
    %299 = vst.msk [vmem:[#allocation2] sm:$0xff] %vm298, %v295
    %s300 = scalar_lea.vmem %s0, 16
    %v301 = vld [vmem:[%s300] sm:$0xff]
    %v302 = vld [vmem:[%s300 + $0x8] sm:$0xff]
    %303 = vmatprep.subr.mxu0 0.0
    %304 = vmatpush1.msra.mxu0 %v301
    %305 = vmatprep.subr.mxu0 0.0
    %306 = vmatpush1.msra.mxu0 %v302
    %307 = vmatprep.subr.mxu0 0.0
    %308 = vmatpush1.msra.mxu0 0.0
    %309 = vmatprep.subr.mxu0 0.0
    %310 = vmatpush1.msra.mxu0 0.0
    %311 = vmatprep.subr.mxu0 0.0
    %312 = vmatpush1.msra.mxu0 0.0
    %313 = vmatprep.subr.mxu0 0.0
    %314 = vmatpush1.msra.mxu0 0.0
    %315 = vmatprep.subr.mxu0 0.0
    %316 = vmatpush1.msra.mxu0 0.0
    %317 = vmatprep.subr.mxu0 0.0
    %318 = vmatpush1.msra.mxu0 0.0
    %319 = vmatprep.subr.mxu0 0.0
    %320 = vmatpush1.msra.mxu0 0.0
    %321 = vmatprep.subr.mxu0 0.0
    %322 = vmatpush1.msra.mxu0 0.0
    %323 = vmatprep.subr.mxu0 0.0
    %324 = vmatpush1.msra.mxu0 0.0
    %325 = vmatprep.subr.mxu0 0.0
    %326 = vmatpush1.msra.mxu0 0.0
    %327 = vmatprep.subr.mxu0 0.0
    %328 = vmatpush1.msra.mxu0 0.0
    %329 = vmatprep.subr.mxu0 0.0
    %330 = vmatpush1.msra.mxu0 0.0
    %331 = vmatprep.subr.mxu0 0.0
    %332 = vmatpush1.msra.mxu0 0.0
    %333 = vmatprep.subr.mxu0 0.0
    %334 = vmatpush1.msra.mxu0 0.0
    %335 = vmatprep.subr.mxu0 0.0
    %336 = vmatpush1.msra.mxu0 0.0
    %337 = vmatprep.subr.mxu0 0.0
    %338 = vmatpush1.msra.mxu0 0.0
    %339 = vmatprep.subr.mxu0 0.0
    %340 = vmatpush1.msra.mxu0 0.0
    %341 = vmatprep.subr.mxu0 0.0
    %342 = vmatpush1.msra.mxu0 0.0
    %343 = vmatprep.subr.mxu0 0.0
    %344 = vmatpush1.msra.mxu0 0.0
    %345 = vmatprep.subr.mxu0 0.0
    %346 = vmatpush1.msra.mxu0 0.0
    %347 = vmatprep.subr.mxu0 0.0
    %348 = vmatpush1.msra.mxu0 0.0
    %349 = vmatprep.subr.mxu0 0.0
    %350 = vmatpush1.msra.mxu0 0.0
    %351 = vmatprep.subr.mxu0 0.0
    %352 = vmatpush1.msra.mxu0 0.0
    %353 = vmatprep.subr.mxu0 0.0
    %354 = vmatpush1.msra.mxu0 0.0
    %355 = vmatprep.subr.mxu0 0.0
    %356 = vmatpush1.msra.mxu0 0.0
    %357 = vmatprep.subr.mxu0 0.0
    %358 = vmatpush1.msra.mxu0 0.0
    %359 = vmatprep.subr.mxu0 0.0
    %360 = vmatpush1.msra.mxu0 0.0
    %361 = vmatprep.subr.mxu0 0.0
    %362 = vmatpush1.msra.mxu0 0.0
    %363 = vmatprep.subr.mxu0 0.0
    %364 = vmatpush1.msra.mxu0 0.0
    %365 = vmatprep.subr.mxu0 0.0
    %366 = vmatpush1.msra.mxu0 0.0
    %367 = vmatprep.mubr.f32.mxu0 0.0
    %368 = vmatmul.mubr.f32.gmra.mrb[0].mxu0 %v83
    %v369 = vpop.f32.mrb[0].mxu0
    %v370 = vadd.f32 %v44, %v369
    %v371 = vpop.f32.mrb[0].mxu0
    %372 = vmatprep.mubr.f32.mxu0 0.0
    %373 = vmatmul.mubr.f32.gmra.mrb[0].mxu0 %v86
    %v374 = vpop.f32.mrb[0].mxu0
    %v375 = vadd.f32 %v49, %v374
    %v376 = vpop.f32.mrb[0].mxu0
    %377 = vmatprep.mubr.f32.mxu0 0.0
    %378 = vmatmul.mubr.f32.gmra.mrb[0].mxu0 %v89
    %v379 = vpop.f32.mrb[0].mxu0
    %v380 = vadd.f32 %v54, %v379
    %v381 = vpop.f32.mrb[0].mxu0
    %382 = vmatprep.mubr.f32.mxu0 0.0
    %383 = vmatmul.mubr.f32.gmra.mrb[0].mxu0 %v92
    %v384 = vpop.f32.mrb[0].mxu0
    %v385 = vadd.f32 %v59, %v384
    %v386 = vpop.f32.mrb[0].mxu0
    %387 = vmatprep.mubr.f32.mxu0 0.0
    %388 = vmatmul.mubr.f32.gmra.mrb[0].mxu0 %v95
    %v389 = vpop.f32.mrb[0].mxu0
    %v390 = vadd.f32 %v64, %v389
    %v391 = vpop.f32.mrb[0].mxu0
    %392 = vmatprep.mubr.f32.mxu0 0.0
    %393 = vmatmul.mubr.f32.gmra.mrb[0].mxu0 %v98
    %v394 = vpop.f32.mrb[0].mxu0
    %v395 = vadd.f32 %v69, %v394
    %v396 = vpop.f32.mrb[0].mxu0
    %397 = vmatprep.mubr.f32.mxu0 0.0
    %398 = vmatmul.mubr.f32.gmra.mrb[0].mxu0 %v101
    %v399 = vpop.f32.mrb[0].mxu0
    %v400 = vadd.f32 %v74, %v399
    %v401 = vpop.f32.mrb[0].mxu0
    %402 = vmatprep.mubr.f32.mxu0 0.0
    %403 = vmatmul.mubr.f32.gmra.mrb[0].mxu0 %v104
    %v404 = vpop.f32.mrb[0].mxu0
    %v405 = vadd.f32 %v79, %v404
    %v406 = vpop.f32.mrb[0].mxu0
    %407 = vdwg.mxu0
    %v408 = vmax.f32 %v370, 0.0
    %v409 = vmax.f32 %v375, 0.0
    %v410 = vmax.f32 %v380, 0.0
    %v411 = vmax.f32 %v385, 0.0
    %v412 = vmax.f32 %v390, 0.0
    %v413 = vmax.f32 %v395, 0.0
    %v414 = vmax.f32 %v400, 0.0
    %v415 = vmax.f32 %v405, 0.0
    %416 = vmatprep.subr.mxu0 0.0
    %417 = vmatpush1.msra.mxu0 %v408
    %418 = vmatprep.subr.mxu0 0.0
    %419 = vmatpush1.msra.mxu0 %v409
    %420 = vmatprep.subr.mxu0 0.0
    %421 = vmatpush1.msra.mxu0 %v410
    %422 = vmatprep.subr.mxu0 0.0
    %423 = vmatpush1.msra.mxu0 %v411
    %424 = vmatprep.subr.mxu0 0.0
    %425 = vmatpush1.msra.mxu0 %v412
    %426 = vmatprep.subr.mxu0 0.0
    %427 = vmatpush1.msra.mxu0 %v413
    %428 = vmatprep.subr.mxu0 0.0
    %429 = vmatpush1.msra.mxu0 %v414
    %430 = vmatprep.subr.mxu0 0.0
    %431 = vmatpush1.msra.mxu0 %v415
    %432 = vmatprep.subr.mxu0 0.0
    %433 = vmatpush1.msra.mxu0 0.0
    %434 = vmatprep.subr.mxu0 0.0
    %435 = vmatpush1.msra.mxu0 0.0
    %436 = vmatprep.subr.mxu0 0.0
    %437 = vmatpush1.msra.mxu0 0.0
    %438 = vmatprep.subr.mxu0 0.0
    %439 = vmatpush1.msra.mxu0 0.0
    %440 = vmatprep.subr.mxu0 0.0
    %441 = vmatpush1.msra.mxu0 0.0
    %442 = vmatprep.subr.mxu0 0.0
    %443 = vmatpush1.msra.mxu0 0.0
    %444 = vmatprep.subr.mxu0 0.0
    %445 = vmatpush1.msra.mxu0 0.0
    %446 = vmatprep.subr.mxu0 0.0
    %447 = vmatpush1.msra.mxu0 0.0
    %448 = vmatprep.subr.mxu0 0.0
    %449 = vmatpush1.msra.mxu0 0.0
    %450 = vmatprep.subr.mxu0 0.0
    %451 = vmatpush1.msra.mxu0 0.0
    %452 = vmatprep.subr.mxu0 0.0
    %453 = vmatpush1.msra.mxu0 0.0
    %454 = vmatprep.subr.mxu0 0.0
    %455 = vmatpush1.msra.mxu0 0.0
    %456 = vmatprep.subr.mxu0 0.0
    %457 = vmatpush1.msra.mxu0 0.0
    %458 = vmatprep.subr.mxu0 0.0
    %459 = vmatpush1.msra.mxu0 0.0
    %460 = vmatprep.subr.mxu0 0.0
    %461 = vmatpush1.msra.mxu0 0.0
    %462 = vmatprep.subr.mxu0 0.0
    %463 = vmatpush1.msra.mxu0 0.0
    %464 = vmatprep.subr.mxu0 0.0
    %465 = vmatpush1.msra.mxu0 0.0
    %466 = vmatprep.subr.mxu0 0.0
    %467 = vmatpush1.msra.mxu0 0.0
    %468 = vmatprep.subr.mxu0 0.0
    %469 = vmatpush1.msra.mxu0 0.0
    %470 = vmatprep.subr.mxu0 0.0
    %471 = vmatpush1.msra.mxu0 0.0
    %472 = vmatprep.subr.mxu0 0.0
    %473 = vmatpush1.msra.mxu0 0.0
    %474 = vmatprep.subr.mxu0 0.0
    %475 = vmatpush1.msra.mxu0 0.0
    %476 = vmatprep.subr.mxu0 0.0
    %477 = vmatpush1.msra.mxu0 0.0
    %478 = vmatprep.subr.mxu0 0.0
    %479 = vmatpush1.msra.mxu0 0.0
    %480 = vmatprep.mubr.f32.mxu0 0.0
    %481 = vmatmul.mubr.f32.gmra.mrb[0].mxu0 %v226
    %v482 = vpop.f32.mrb[0].mxu0
    %v483 = vadd.f32 %v222, %v482
    %v484 = vpop.f32.mrb[0].mxu0
    %485 = vdwg.mxu0
    %s486 = scalar_lea.vmem [#allocation2], 8
    %487 = vst.msk [vmem:[%s486] sm:$0xff] %vm298, %v483
    // Predicated region
    $region22: #{gates_forward.1} parent=1 // pred_check
      _
    $region23: #{gates_forward.1} parent=1 // pred_check_branch
      %489 = sbr.rel (0) target = $region25
    $region24: #{gates_forward.1} parent=1 // pred_region
      %s491 = ssub.s32 256, 256
      %492 = vsyncadd [#allocation3], %s491
      %s493 = sshll.u32 [#allocation2], 4
      %s494 = int_to_ptr.vmem [resolvable:$true] %s493
      %499 = dma.vmem_to_hbm [thread:$0]  %s494, 256, %s5, [#allocation3], 128, 128, 8
    $region25: #{gates_forward.1} parent=1 // pred_fallthru
      _
    // Predicated region
    $region26: #{gates_forward.1} parent=1 // pred_check
      _
    $region27: #{gates_forward.1} parent=1 // pred_check_branch
      %501 = sbr.rel (0) target = $region29
    $region28: #{gates_forward.1} parent=1 // pred_region
      %502 = dma.done [#allocation3], 256
    $region29: #{gates_forward.1} parent=1 // pred_fallthru
      _
    %503 = vsyncpa [#allocation3], 1

</llo_original>
